<compile_context>
chip_gen: v5e
topology: v5e:2x2
jax: 0.10.0
libtpu: 0.0.40
codegen_flags: <defaults>
</compile_context>

<pallas_src>
import math

import numpy as np

import jax
import jax.numpy as jnp
from jax.experimental import pallas as pl
from jax.experimental.pallas import tpu as pltpu

INPUT_DIM = 16
OUTPUT_DIM = 32
DEGREE = 3          # degree+1 = 4 basis functions per subspace
TILE_ROWS = 1024    # rows of the flattened input per grid step


def _round_up(v, m):
    return ((v + m - 1) // m) * m


def _attention_kan_kernel(x_ref, coef_ref, w_rep_ref, b_gb_ref, w_score_ref,
                          w_kv_ref, w_out_ref, b_out_ref, o_ref):
    f32 = jnp.float32
    bf16 = jnp.bfloat16

    packed = w_score_ref.shape[0]             # 2 * (degree+1) * input_dim (=128)
    d1 = coef_ref.shape[0]                    # degree + 1

    # Narrow transcendentals on raw f32 x (16 lanes) BEFORE replication.
    x = x_ref[...].astype(f32)                # (TB, I)
    th = jnp.tanh(x)
    h0 = (math.pi ** -0.25) * jnp.exp(-0.5 * (x * x))

    # One bf16 MXU matmul replicates [x | tanh(x) | h0] into the packed 128-lane
    # basis layout and computes the folded, pre-scaled query-key vector g.
    xin = jnp.concatenate([x, th, h0], axis=-1).astype(bf16)        # (TB, 3I)
    xg = jnp.dot(xin, w_rep_ref[...], preferred_element_type=f32)   # (TB, 3*packed)
    arg = xg[:, :packed]                      # tanh(x) on cheb lanes, x on herm lanes
    rest = xg[:, packed:] + b_gb_ref[...]     # bias only on the [b0 | g] halves
    b0 = rest[:, :packed]                     # 1 on cheb lanes, psi_0(x) on herm lanes
    g = rest[:, packed:]                      # replicated scaled query-key vector

    # KAN basis via a per-lane Horner polynomial:
    #   B[lane] = b0[lane] * sum_k coef[k, lane] * arg[lane]^k
    # (monomial coefficients of T_d / Hermite-function polynomials, host-folded).
    coef = coef_ref[...].astype(f32)
    if d1 == 1:
        t = coef[0:1, :] * jnp.ones_like(arg)
    else:
        t = coef[d1 - 1:d1, :] * arg + coef[d1 - 2:d1 - 1, :]
        for k in range(d1 - 3, -1, -1):
            t = t * arg + coef[k:k + 1, :]
    B = t * b0

    # Attention scores over the 2*O kv tokens (q.b_k dropped: shift invariant).
    s = jnp.dot((g * B).astype(bf16), w_score_ref[...],
                preferred_element_type=f32)                         # (TB, 2*O)
    m = jnp.max(s, axis=-1, keepdims=True)
    e = jnp.exp(s - m)
    a = e * pl.reciprocal(jnp.sum(e, axis=-1, keepdims=True), approx=True)

    # Attention-weighted kv (still basis-factored), then the folded
    # Wv^T Wo^T Wp^T projection (block sum absorbed by row-tiled w_out).
    p_kv = jnp.dot(a.astype(bf16), w_kv_ref[...], preferred_element_type=f32)
    y = jnp.dot((B * p_kv).astype(bf16), w_out_ref[...],
                preferred_element_type=f32) + b_out_ref[...]
    o_ref[...] = y.astype(o_ref.dtype)


def attention_kan_linear(x, p, *, tile_rows=TILE_ROWS):
    in_dim = p["Wq"].shape[0]
    out_dim = p["Wp"].shape[0]
    d1 = p["Cc"].shape[-1]
    packed = 2 * d1 * in_dim
    scale = 1.0 / math.sqrt(in_dim)
    f32 = jnp.float32
    bf16 = jnp.bfloat16

    xf = x.reshape(-1, in_dim).astype(f32)            # torch.reshape(x, (-1, inputdim))
    n = xf.shape[0]
    # >= 2 grid steps whenever possible so both v7x TensorCores get work.
    tb = min(tile_rows, max(8, _round_up((n + 1) // 2, 8)))
    n_pad = _round_up(n, tb)
    if n_pad != n:
        xf = jnp.pad(xf, ((0, n_pad - n), (0, 0)))

    # ---------------- host-side weight folding ----------------
    eye = jnp.eye(in_dim, dtype=f32)
    rep_half = jnp.tile(eye, (1, d1))                 # (I, d1*I)
    z_half = jnp.zeros((in_dim, d1 * in_dim), f32)
    z_row = jnp.zeros((in_dim, packed), f32)

    wqk = (p["Wq"].T @ p["Wk"]) * scale               # g = x @ wqk + bqk (pre-scaled)
    bqk = (p["bq"] @ p["Wk"]) * scale

    # w_rep: rows = [x(16) | tanh(x)(16) | h0(16)], cols = [arg(128) | b0(128) | g(128)]
    arg_blk = jnp.concatenate([
        jnp.concatenate([z_half, rep_half], axis=1),  # x rows    -> Hermite arg lanes
        jnp.concatenate([rep_half, z_half], axis=1),  # tanh rows -> Chebyshev arg lanes
        z_row], axis=0)
    b0_blk = jnp.concatenate([
        z_row, z_row,
        jnp.concatenate([z_half, rep_half], axis=1)], axis=0)  # h0 rows -> Hermite b0 lanes
    g_blk = jnp.concatenate([
        jnp.tile(wqk, (1, 2 * d1)), z_row, z_row], axis=0)
    w_rep = jnp.concatenate([arg_blk, b0_blk, g_blk], axis=1).astype(bf16)  # (3I, 3*packed)

    # bias only for the [b0 | g] halves: +1 on Chebyshev b0 lanes, +bqk on g lanes.
    cheb_one = (jnp.arange(packed) < d1 * in_dim).astype(f32)
    b_gb = jnp.concatenate([cheb_one, jnp.tile(bqk, 2 * d1)])[None, :]       # (1, 2*packed)

    # per-lane monomial coefficient rows for the Horner basis evaluation
    cheb_mono = np.zeros((d1, d1), np.float64)
    cheb_mono[0, 0] = 1.0
    if d1 > 1:
        cheb_mono[1, 1] = 1.0
    for nn in range(2, d1):
        cheb_mono[nn] = 2.0 * np.roll(cheb_mono[nn - 1], 1) - cheb_mono[nn - 2]
    herm_mono = np.zeros((d1, d1), np.float64)
    herm_mono[0, 0] = 1.0
    if d1 > 1:
        herm_mono[1, 1] = math.sqrt(2.0)
    for nn in range(2, d1):
        herm_mono[nn] = (math.sqrt(2.0 / nn) * np.roll(herm_mono[nn - 1], 1)
                         - math.sqrt((nn - 1.0) / nn) * herm_mono[nn - 2])
    coef_np = np.zeros((d1, packed), np.float32)
    for blk in range(2 * d1):
        fam = cheb_mono if blk < d1 else herm_mono
        deg = blk if blk < d1 else blk - d1
        coef_np[:, blk * in_dim:(blk + 1) * in_dim] = fam[deg][:, None]
    coef = jnp.asarray(coef_np)                                              # (d1, packed)

    # packed score weight: rows = (block, i) lanes, cols = 2*O kv tokens
    cc_rows = jnp.transpose(p["Cc"], (2, 0, 1)).reshape(d1 * in_dim, out_dim)
    ch_rows = jnp.transpose(p["Ch"], (2, 0, 1)).reshape(d1 * in_dim, out_dim)
    zr = jnp.zeros_like(cc_rows)
    w_score = jnp.concatenate(
        [jnp.concatenate([cc_rows, zr], axis=1),
         jnp.concatenate([zr, ch_rows], axis=1)], axis=0)                    # (packed, 2*O)

    # packed kv weight: rows = 2*O kv tokens, cols = (block, i) lanes
    cc_cols = jnp.transpose(p["Cc"], (1, 2, 0)).reshape(out_dim, d1 * in_dim)
    ch_cols = jnp.transpose(p["Ch"], (1, 2, 0)).reshape(out_dim, d1 * in_dim)
    zc = jnp.zeros_like(cc_cols)
    w_kv = jnp.concatenate(
        [jnp.concatenate([cc_cols, zc], axis=1),
         jnp.concatenate([zc, ch_cols], axis=1)], axis=0)                    # (2*O, packed)

    # folded value / attn-out / final projections + biases
    wvop = p["Wv"].T @ p["Wo"].T @ p["Wp"].T                                 # (I, O)
    w_out = jnp.tile(wvop, (2 * d1, 1))                                      # (packed, O)
    b_out = ((p["bv"] @ p["Wo"].T + p["bo"]) @ p["Wp"].T + p["bp"])[None, :]

    args = (xf, coef, w_rep, b_gb.astype(f32),
            w_score.astype(bf16), w_kv.astype(bf16), w_out.astype(bf16),
            b_out.astype(f32))

    def _const(ndim):
        return lambda i: (0,) * ndim

    in_specs = [pl.BlockSpec((tb, in_dim), lambda i: (i, 0))]
    in_specs += [pl.BlockSpec(a.shape, _const(a.ndim)) for a in args[1:]]
    out_specs = pl.BlockSpec((tb, out_dim), lambda i: (i, 0))

    y = pl.pallas_call(
        _attention_kan_kernel,
        out_shape=jax.ShapeDtypeStruct((n_pad, out_dim), f32),
        grid_spec=pltpu.PrefetchScalarGridSpec(
            num_scalar_prefetch=0,
            grid=(n_pad // tb,),
            in_specs=in_specs,
            out_specs=out_specs),
        compiler_params=pltpu.CompilerParams(
            dimension_semantics=("parallel",),
            vmem_limit_bytes=32 * 1024 * 1024),
    )(*args)
    return y[:n]


def init_params(key, in_dim, out_dim, degree):
    d1 = degree + 1
    ks = jax.random.split(key, 11)
    std = 1.0 / math.sqrt(in_dim)
    return {
        "Cc": jax.random.normal(ks[0], (in_dim, out_dim, d1), jnp.float32) * (std / d1),
        "Ch": jax.random.normal(ks[1], (in_dim, out_dim, d1), jnp.float32) * (std / d1),
        "Wq": jax.random.normal(ks[2], (in_dim, in_dim), jnp.float32) * std,
        "Wk": jax.random.normal(ks[3], (in_dim, in_dim), jnp.float32) * std,
        "Wv": jax.random.normal(ks[4], (in_dim, in_dim), jnp.float32) * std,
        "bq": jax.random.normal(ks[5], (in_dim,), jnp.float32) * 0.01,
        "bk": jax.random.normal(ks[6], (in_dim,), jnp.float32) * 0.01,
        "bv": jax.random.normal(ks[7], (in_dim,), jnp.float32) * 0.01,
        "Wo": jax.random.normal(ks[8], (in_dim, in_dim), jnp.float32) * std,
        "bo": jnp.zeros((in_dim,), jnp.float32),
        "Wp": jax.random.normal(ks[9], (out_dim, in_dim), jnp.float32) * std,
        "bp": jax.random.normal(ks[10], (out_dim,), jnp.float32) * 0.01,
    }


def reference(x, p):
    """Pure-JAX re-statement of the PyTorch forward (for verification)."""
    in_dim = p["Wq"].shape[0]
    d1 = p["Cc"].shape[-1]
    xf = x.reshape(-1, in_dim).astype(jnp.float32)
    t = jnp.tanh(xf)
    cheb = [jnp.ones_like(t), t]
    for _ in range(2, d1):
        cheb.append(2.0 * t * cheb[-1] - cheb[-2])
    cheb = jnp.stack(cheb[:d1], axis=-1)                          # (N, I, D1)
    h0 = (math.pi ** -0.25) * jnp.exp(-0.5 * xf * xf)
    herm = [h0, math.sqrt(2.0) * xf * h0]
    for n in range(2, d1):
        herm.append(math.sqrt(2.0 / n) * xf * herm[-1]
                    - math.sqrt((n - 1.0) / n) * herm[-2])
    herm = jnp.stack(herm[:d1], axis=-1)
    s_c = jnp.einsum('nid,iod->nio', cheb, p["Cc"])               # subspace 0 (einsum=False)
    s_h = jnp.einsum('nid,iod->nio', herm, p["Ch"])               # subspace 1 (einsum=False)
    kv = jnp.transpose(jnp.concatenate([s_c, s_h], axis=-1), (0, 2, 1))  # (N, 2O, I)
    q = xf @ p["Wq"].T + p["bq"]
    k = jnp.einsum('nji,oi->njo', kv, p["Wk"]) + p["bk"]
    v = jnp.einsum('nji,oi->njo', kv, p["Wv"]) + p["bv"]
    s = jnp.einsum('ni,nji->nj', q, k) / math.sqrt(in_dim)
    a = jax.nn.softmax(s, axis=-1)
    ctx = jnp.einsum('nj,nji->ni', a, v)
    out = ctx @ p["Wo"].T + p["bo"]
    return out @ p["Wp"].T + p["bp"]


if __name__ == "__main__":
    key = jax.random.PRNGKey(0)
    k_x, k_p = jax.random.split(key)
    # NCHW-style input; inputdim = 16, so it flattens to (2*4*16, 16) = (128, 16) rows.
    x = jax.random.normal(k_x, (2, 4, 16, 16), jnp.float32)
    params = init_params(k_p, INPUT_DIM, OUTPUT_DIM, DEGREE)

    y = attention_kan_linear(x, params)
    y = jax.block_until_ready(y)

    y_ref = reference(x, params)
    assert y.shape == (x.size // INPUT_DIM, OUTPUT_DIM), y.shape
    max_err = float(jnp.max(jnp.abs(y - y_ref)))
    assert max_err < 5e-2, f"max abs err {max_err}"
    print("KERNEL_OK")
</pallas_src>

<mosaic_0001>
module attributes {stable_mosaic.version = 11 : i64} {
  func.func @_attention_kan_kernel(%arg0: i32, %arg1: memref<64x16xf32, #tpu.memory_space<vmem>>, %arg2: memref<4x128xf32, #tpu.memory_space<vmem>>, %arg3: memref<48x384xbf16, #tpu.memory_space<vmem>>, %arg4: memref<1x256xf32, #tpu.memory_space<vmem>>, %arg5: memref<128x64xbf16, #tpu.memory_space<vmem>>, %arg6: memref<64x128xbf16, #tpu.memory_space<vmem>>, %arg7: memref<128x32xbf16, #tpu.memory_space<vmem>>, %arg8: memref<1x32xf32, #tpu.memory_space<vmem>>, %arg9: memref<64x32xf32, #tpu.memory_space<vmem>>) attributes {dimension_semantics = [#tpu.dimension_semantics<parallel>], iteration_bounds = array<i64: 2>, scalar_prefetch = 0 : i64, scratch_operands = 0 : i64, tpu.core_type = #tpu.core_type<tc>, window_params = [{transform_indices = @transform_0, window_bounds = array<i64: 64, 16>}, {pipeline_mode = #tpu.pipeline_mode<synchronous>, transform_indices = @transform_1, window_bounds = array<i64: 4, 128>}, {pipeline_mode = #tpu.pipeline_mode<synchronous>, transform_indices = @transform_2, window_bounds = array<i64: 48, 384>}, {pipeline_mode = #tpu.pipeline_mode<synchronous>, transform_indices = @transform_3, window_bounds = array<i64: 1, 256>}, {pipeline_mode = #tpu.pipeline_mode<synchronous>, transform_indices = @transform_4, window_bounds = array<i64: 128, 64>}, {pipeline_mode = #tpu.pipeline_mode<synchronous>, transform_indices = @transform_5, window_bounds = array<i64: 64, 128>}, {pipeline_mode = #tpu.pipeline_mode<synchronous>, transform_indices = @transform_6, window_bounds = array<i64: 128, 32>}, {pipeline_mode = #tpu.pipeline_mode<synchronous>, transform_indices = @transform_7, window_bounds = array<i64: 1, 32>}, {transform_indices = @transform_8, window_bounds = array<i64: 64, 32>}]} {
    %c0 = arith.constant 0 : index
    %c0_0 = arith.constant 0 : index
    %0 = vector.load %arg1[%c0, %c0_0] : memref<64x16xf32, #tpu.memory_space<vmem>>, vector<64x16xf32>
    %1 = math.tanh %0 : vector<64x16xf32>
    %2 = arith.mulf %0, %0 : vector<64x16xf32>
    %cst = arith.constant -5.000000e-01 : f32
    %3 = vector.broadcast %cst : f32 to vector<64x16xf32>
    %4 = arith.mulf %3, %2 : vector<64x16xf32>
    %5 = math.exp %4 : vector<64x16xf32>
    %cst_1 = arith.constant 0.751125574 : f32
    %6 = vector.broadcast %cst_1 : f32 to vector<64x16xf32>
    %7 = arith.mulf %6, %5 : vector<64x16xf32>
    %8 = tpu.concatenate %0, %1, %7 in 1 : vector<64x16xf32>, vector<64x16xf32>, vector<64x16xf32> -> vector<64x48xf32>
    %9 = arith.truncf %8 : vector<64x48xf32> to vector<64x48xbf16>
    %c0_2 = arith.constant 0 : index
    %c0_3 = arith.constant 0 : index
    %10 = vector.load %arg3[%c0_2, %c0_3] : memref<48x384xbf16, #tpu.memory_space<vmem>>, vector<48x384xbf16>
    %cst_4 = arith.constant dense<0.000000e+00> : vector<64x384xf32>
    %11 = tpu.matmul %9, %10, %cst_4 {dimension_numbers = #tpu.dot_dimension_numbers<[1], [0], [0], [1], [0, 0, 1, 1], [], []>} : vector<64x48xbf16>, vector<48x384xbf16>, vector<64x384xf32> -> vector<64x384xf32>
    %12 = vector.extract_strided_slice %11 {offsets = [0, 0], sizes = [64, 128], strides = [1, 1]} : vector<64x384xf32> to vector<64x128xf32>
    %13 = vector.extract_strided_slice %11 {offsets = [0, 128], sizes = [64, 256], strides = [1, 1]} : vector<64x384xf32> to vector<64x256xf32>
    %c0_5 = arith.constant 0 : index
    %c0_6 = arith.constant 0 : index
    %14 = vector.load %arg4[%c0_5, %c0_6] : memref<1x256xf32, #tpu.memory_space<vmem>>, vector<1x256xf32>
    %15 = vector.broadcast %14 : vector<1x256xf32> to vector<64x256xf32>
    %16 = arith.addf %13, %15 : vector<64x256xf32>
    %17 = vector.extract_strided_slice %16 {offsets = [0, 0], sizes = [64, 128], strides = [1, 1]} : vector<64x256xf32> to vector<64x128xf32>
    %18 = vector.extract_strided_slice %16 {offsets = [0, 128], sizes = [64, 128], strides = [1, 1]} : vector<64x256xf32> to vector<64x128xf32>
    %c0_7 = arith.constant 0 : index
    %c0_8 = arith.constant 0 : index
    %19 = vector.load %arg2[%c0_7, %c0_8] : memref<4x128xf32, #tpu.memory_space<vmem>>, vector<4x128xf32>
    %20 = vector.extract_strided_slice %19 {offsets = [3, 0], sizes = [1, 128], strides = [1, 1]} : vector<4x128xf32> to vector<1x128xf32>
    %21 = vector.broadcast %20 : vector<1x128xf32> to vector<64x128xf32>
    %22 = arith.mulf %21, %12 : vector<64x128xf32>
    %23 = vector.extract_strided_slice %19 {offsets = [2, 0], sizes = [1, 128], strides = [1, 1]} : vector<4x128xf32> to vector<1x128xf32>
    %24 = vector.broadcast %23 : vector<1x128xf32> to vector<64x128xf32>
    %25 = arith.addf %22, %24 : vector<64x128xf32>
    %26 = arith.mulf %25, %12 : vector<64x128xf32>
    %27 = vector.extract_strided_slice %19 {offsets = [1, 0], sizes = [1, 128], strides = [1, 1]} : vector<4x128xf32> to vector<1x128xf32>
    %28 = vector.broadcast %27 : vector<1x128xf32> to vector<64x128xf32>
    %29 = arith.addf %26, %28 : vector<64x128xf32>
    %30 = arith.mulf %29, %12 : vector<64x128xf32>
    %31 = vector.extract_strided_slice %19 {offsets = [0, 0], sizes = [1, 128], strides = [1, 1]} : vector<4x128xf32> to vector<1x128xf32>
    %32 = vector.broadcast %31 : vector<1x128xf32> to vector<64x128xf32>
    %33 = arith.addf %30, %32 : vector<64x128xf32>
    %34 = arith.mulf %33, %17 : vector<64x128xf32>
    %35 = arith.mulf %18, %34 : vector<64x128xf32>
    %36 = arith.truncf %35 : vector<64x128xf32> to vector<64x128xbf16>
    %c0_9 = arith.constant 0 : index
    %c0_10 = arith.constant 0 : index
    %37 = vector.load %arg5[%c0_9, %c0_10] : memref<128x64xbf16, #tpu.memory_space<vmem>>, vector<128x64xbf16>
    %cst_11 = arith.constant dense<0.000000e+00> : vector<64x64xf32>
    %38 = tpu.matmul %36, %37, %cst_11 {dimension_numbers = #tpu.dot_dimension_numbers<[1], [0], [0], [1], [0, 0, 1, 1], [], []>} : vector<64x128xbf16>, vector<128x64xbf16>, vector<64x64xf32> -> vector<64x64xf32>
    %cst_12 = arith.constant dense<0xFF800000> : vector<64xf32>
    %39 = vector.multi_reduction <maximumf>, %38, %cst_12 [1] : vector<64x64xf32> to vector<64xf32>
    %40 = vector.shape_cast %39 : vector<64xf32> to vector<64x1xf32>
    %41 = vector.broadcast %40 : vector<64x1xf32> to vector<64x64xf32>
    %42 = arith.subf %38, %41 : vector<64x64xf32>
    %43 = math.exp %42 : vector<64x64xf32>
    %cst_13 = arith.constant dense<0.000000e+00> : vector<64xf32>
    %44 = vector.multi_reduction <add>, %43, %cst_13 [1] : vector<64x64xf32> to vector<64xf32>
    %45 = vector.shape_cast %44 : vector<64xf32> to vector<64x1xf32>
    %46 = tpu.reciprocal %45 {approx = true} : vector<64x1xf32> -> vector<64x1xf32>
    %47 = vector.broadcast %46 : vector<64x1xf32> to vector<64x64xf32>
    %48 = arith.mulf %43, %47 : vector<64x64xf32>
    %49 = arith.truncf %48 : vector<64x64xf32> to vector<64x64xbf16>
    %c0_14 = arith.constant 0 : index
    %c0_15 = arith.constant 0 : index
    %50 = vector.load %arg6[%c0_14, %c0_15] : memref<64x128xbf16, #tpu.memory_space<vmem>>, vector<64x128xbf16>
    %cst_16 = arith.constant dense<0.000000e+00> : vector<64x128xf32>
    %51 = tpu.matmul %49, %50, %cst_16 {dimension_numbers = #tpu.dot_dimension_numbers<[1], [0], [0], [1], [0, 0, 1, 1], [], []>} : vector<64x64xbf16>, vector<64x128xbf16>, vector<64x128xf32> -> vector<64x128xf32>
    %52 = arith.mulf %34, %51 : vector<64x128xf32>
    %53 = arith.truncf %52 : vector<64x128xf32> to vector<64x128xbf16>
    %c0_17 = arith.constant 0 : index
    %c0_18 = arith.constant 0 : index
    %54 = vector.load %arg7[%c0_17, %c0_18] : memref<128x32xbf16, #tpu.memory_space<vmem>>, vector<128x32xbf16>
    %cst_19 = arith.constant dense<0.000000e+00> : vector<64x32xf32>
    %55 = tpu.matmul %53, %54, %cst_19 {dimension_numbers = #tpu.dot_dimension_numbers<[1], [0], [0], [1], [0, 0, 1, 1], [], []>} : vector<64x128xbf16>, vector<128x32xbf16>, vector<64x32xf32> -> vector<64x32xf32>
    %c0_20 = arith.constant 0 : index
    %c0_21 = arith.constant 0 : index
    %56 = vector.load %arg8[%c0_20, %c0_21] : memref<1x32xf32, #tpu.memory_space<vmem>>, vector<1x32xf32>
    %57 = vector.broadcast %56 : vector<1x32xf32> to vector<64x32xf32>
    %58 = arith.addf %55, %57 : vector<64x32xf32>
    %c0_22 = arith.constant 0 : index
    %c0_23 = arith.constant 0 : index
    %59 = vector.load %arg9[%c0_22, %c0_23] : memref<64x32xf32, #tpu.memory_space<vmem>>, vector<64x32xf32>
    tpu.vector_store %arg9[%c0_22, %c0_23], %58 {strides = array<i32>} : memref<64x32xf32, #tpu.memory_space<vmem>>, vector<64x32xf32>,
    return
  }
  func.func @transform_0(%arg0: i32) -> (i32, i32) {
    %c0_i32 = arith.constant 0 : i32
    %c0_i32_0 = arith.constant 0 : i32
    return %arg0, %c0_i32 : i32, i32
  }
  func.func @transform_1(%arg0: i32) -> (i32, i32) {
    %c0_i32 = arith.constant 0 : i32
    %c0_i32_0 = arith.constant 0 : i32
    %c0_i32_1 = arith.constant 0 : i32
    return %c0_i32, %c0_i32_0 : i32, i32
  }
  func.func @transform_2(%arg0: i32) -> (i32, i32) {
    %c0_i32 = arith.constant 0 : i32
    %c0_i32_0 = arith.constant 0 : i32
    %c0_i32_1 = arith.constant 0 : i32
    return %c0_i32, %c0_i32_0 : i32, i32
  }
  func.func @transform_3(%arg0: i32) -> (i32, i32) {
    %c0_i32 = arith.constant 0 : i32
    %c0_i32_0 = arith.constant 0 : i32
    %c0_i32_1 = arith.constant 0 : i32
    return %c0_i32, %c0_i32_0 : i32, i32
  }
  func.func @transform_4(%arg0: i32) -> (i32, i32) {
    %c0_i32 = arith.constant 0 : i32
    %c0_i32_0 = arith.constant 0 : i32
    %c0_i32_1 = arith.constant 0 : i32
    return %c0_i32, %c0_i32_0 : i32, i32
  }
  func.func @transform_5(%arg0: i32) -> (i32, i32) {
    %c0_i32 = arith.constant 0 : i32
    %c0_i32_0 = arith.constant 0 : i32
    %c0_i32_1 = arith.constant 0 : i32
    return %c0_i32, %c0_i32_0 : i32, i32
  }
  func.func @transform_6(%arg0: i32) -> (i32, i32) {
    %c0_i32 = arith.constant 0 : i32
    %c0_i32_0 = arith.constant 0 : i32
    %c0_i32_1 = arith.constant 0 : i32
    return %c0_i32, %c0_i32_0 : i32, i32
  }
  func.func @transform_7(%arg0: i32) -> (i32, i32) {
    %c0_i32 = arith.constant 0 : i32
    %c0_i32_0 = arith.constant 0 : i32
    %c0_i32_1 = arith.constant 0 : i32
    return %c0_i32, %c0_i32_0 : i32, i32
  }
  func.func @transform_8(%arg0: i32) -> (i32, i32) {
    %c0_i32 = arith.constant 0 : i32
    %c0_i32_0 = arith.constant 0 : i32
    return %arg0, %c0_i32 : i32, i32
  }
}

</mosaic_0001>

<llo_original>
// kernel: tpu_custom_call.1
$region0: #{tpu_custom_call.1}
  #allocation0 [shape = 'u32[]', space=smem, size = 0x4, offset = 0x4, fixed_abs, tag = 'smem constant byte address 0x4 - core index']
  #allocation1 [shape = 'u32[72,128]{1,0:T(1,128)}', space=vmem, size = 0x9000, scoped, tag = 'internal scratch']
  %s0 = inlined_call_operand.vmem [shape: f32[128,16], index: 0, kind: input, shape index: {}]
  %s1 = inlined_call_operand.vmem [shape: f32[4,128], index: 1, kind: input, shape index: {}]
  %s2 = inlined_call_operand.vmem [shape: bf16[48,384], index: 2, kind: input, shape index: {}]
  %s3 = inlined_call_operand.vmem [shape: f32[1,256], index: 3, kind: input, shape index: {}]
  %s4 = inlined_call_operand.vmem [shape: bf16[128,64], index: 4, kind: input, shape index: {}]
  %s5 = inlined_call_operand.vmem [shape: bf16[64,128], index: 5, kind: input, shape index: {}]
  %s6 = inlined_call_operand.vmem [shape: bf16[128,32], index: 6, kind: input, shape index: {}]
  %s7 = inlined_call_operand.vmem [shape: f32[1,32], index: 7, kind: input, shape index: {}]
  %s8 = inlined_call_operand.vmem [shape: f32[128,32], index: 8, kind: output, shape index: {}]
  %s9 = sld [smem:[#allocation0]]
  $region65: #{tpu_custom_call.1} parent=0
    _
  %s11 = ssub.s32 1, %s9
  %s12 = scalar_select 0, %s11, %s9
  loop: start=0, step=1, limit=4
  $region2: #{tpu_custom_call.1} parent=0 // loop_pre_header
    _
  $region3: #{tpu_custom_call.1} parent=0 // loop_header
    %s14 = sphi 0, %s18
    %p15 = scmp.ge.s32.totalorder %s14, 4
    %s24 = sphi 0, %s26
    %s27 = sphi 0, %s24
    %s28 = sphi 0, %s27
    %s44 = sphi 0, %s28
    %s48 = sphi 0, %s48
    %s50 = sphi 0, %s48
    %s51 = sphi 0, %s50
    %s65 = sphi 0, %s51
    %s69 = sphi 0, %s69
    %s71 = sphi 0, %s69
    %s72 = sphi 0, %s71
    %s86 = sphi 0, %s72
    %s90 = sphi 0, %s90
    %s92 = sphi 0, %s90
    %s93 = sphi 0, %s92
    %s107 = sphi 0, %s93
    %s111 = sphi 0, %s111
    %s113 = sphi 0, %s111
    %s114 = sphi 0, %s113
    %s128 = sphi 0, %s114
    %s132 = sphi 0, %s132
    %s134 = sphi 0, %s132
    %s135 = sphi 0, %s134
    %s149 = sphi 0, %s135
    %s153 = sphi 0, %s153
    %s155 = sphi 0, %s153
    %s156 = sphi 0, %s155
    %s170 = sphi 0, %s156
    %s174 = sphi 0, %s174
    %s176 = sphi 0, %s174
    %s177 = sphi 0, %s176
    %s191 = sphi 0, %s177
    %s197 = sphi 0, %s199
    %s200 = sphi 0, %s197
    %s201 = sphi 0, %s200
    %s217 = sphi 0, %s201
  $region4: #{tpu_custom_call.1} parent=0 // loop_header_branch
    %17 = sbr.rel (%p15) target = $region8
  $region5: #{tpu_custom_call.1} parent=0 // loop_body
    %s19 = ssub.s32 %s14, 1
    %s20 = ssub.s32 %s14, 2
    %s21 = sadd.s32 %s14, 1
    %s22 = ssub.s32 %s14, %s21
    %p23 = scmp.eq.s32.totalorder %s22, 0
    %s25 = sadd.s32 %s24, 1
    %s26 = scalar_select %p23, %s24, %s25
    %p29 = pneg %p23
    %p30 = scmp.eq.s32.totalorder %s14, 1
    %p31 = por %p29, %p30
    %p32 = scmp.ne.s32.totalorder %s24, %s27
    %p33 = scmp.eq.s32.totalorder %s14, 0
    %p34 = por %p32, %p33
    %p35 = scmp.ne.s32.totalorder %s24, %s27
    %p36 = scmp.eq.s32.totalorder %s19, 1
    %p37 = por %p35, %p36
    %p38 = scmp.ne.s32.totalorder %s27, %s28
    %p39 = scmp.eq.s32.totalorder %s19, 0
    %p40 = por %p38, %p39
    %p41 = scmp.ne.s32.totalorder %s27, %s28
    %p42 = scmp.eq.s32.totalorder %s20, 1
    %p43 = por %p41, %p42
    %p45 = scmp.ne.s32.totalorder %s28, %s44
    %p46 = scmp.eq.s32.totalorder %s20, 0
    %p47 = por %p45, %p46
    %s49 = sadd.s32 %s48, 1
    %p52 = scmp.eq.s32.totalorder %s14, 1
    %p53 = scmp.ne.s32.totalorder %s48, %s50
    %p54 = scmp.eq.s32.totalorder %s14, 0
    %p55 = por %p53, %p54
    %p56 = scmp.ne.s32.totalorder %s48, %s50
    %p57 = scmp.eq.s32.totalorder %s19, 1
    %p58 = por %p56, %p57
    %p59 = scmp.ne.s32.totalorder %s50, %s51
    %p60 = scmp.eq.s32.totalorder %s19, 0
    %p61 = por %p59, %p60
    %p62 = scmp.ne.s32.totalorder %s50, %s51
    %p63 = scmp.eq.s32.totalorder %s20, 1
    %p64 = por %p62, %p63
    %p66 = scmp.ne.s32.totalorder %s51, %s65
    %p67 = scmp.eq.s32.totalorder %s20, 0
    %p68 = por %p66, %p67
    %s70 = sadd.s32 %s69, 1
    %p73 = scmp.eq.s32.totalorder %s14, 1
    %p74 = scmp.ne.s32.totalorder %s69, %s71
    %p75 = scmp.eq.s32.totalorder %s14, 0
    %p76 = por %p74, %p75
    %p77 = scmp.ne.s32.totalorder %s69, %s71
    %p78 = scmp.eq.s32.totalorder %s19, 1
    %p79 = por %p77, %p78
    %p80 = scmp.ne.s32.totalorder %s71, %s72
    %p81 = scmp.eq.s32.totalorder %s19, 0
    %p82 = por %p80, %p81
    %p83 = scmp.ne.s32.totalorder %s71, %s72
    %p84 = scmp.eq.s32.totalorder %s20, 1
    %p85 = por %p83, %p84
    %p87 = scmp.ne.s32.totalorder %s72, %s86
    %p88 = scmp.eq.s32.totalorder %s20, 0
    %p89 = por %p87, %p88
    %s91 = sadd.s32 %s90, 1
    %p94 = scmp.eq.s32.totalorder %s14, 1
    %p95 = scmp.ne.s32.totalorder %s90, %s92
    %p96 = scmp.eq.s32.totalorder %s14, 0
    %p97 = por %p95, %p96
    %p98 = scmp.ne.s32.totalorder %s90, %s92
    %p99 = scmp.eq.s32.totalorder %s19, 1
    %p100 = por %p98, %p99
    %p101 = scmp.ne.s32.totalorder %s92, %s93
    %p102 = scmp.eq.s32.totalorder %s19, 0
    %p103 = por %p101, %p102
    %p104 = scmp.ne.s32.totalorder %s92, %s93
    %p105 = scmp.eq.s32.totalorder %s20, 1
    %p106 = por %p104, %p105
    %p108 = scmp.ne.s32.totalorder %s93, %s107
    %p109 = scmp.eq.s32.totalorder %s20, 0
    %p110 = por %p108, %p109
    %s112 = sadd.s32 %s111, 1
    %p115 = scmp.eq.s32.totalorder %s14, 1
    %p116 = scmp.ne.s32.totalorder %s111, %s113
    %p117 = scmp.eq.s32.totalorder %s14, 0
    %p118 = por %p116, %p117
    %p119 = scmp.ne.s32.totalorder %s111, %s113
    %p120 = scmp.eq.s32.totalorder %s19, 1
    %p121 = por %p119, %p120
    %p122 = scmp.ne.s32.totalorder %s113, %s114
    %p123 = scmp.eq.s32.totalorder %s19, 0
    %p124 = por %p122, %p123
    %p125 = scmp.ne.s32.totalorder %s113, %s114
    %p126 = scmp.eq.s32.totalorder %s20, 1
    %p127 = por %p125, %p126
    %p129 = scmp.ne.s32.totalorder %s114, %s128
    %p130 = scmp.eq.s32.totalorder %s20, 0
    %p131 = por %p129, %p130
    %s133 = sadd.s32 %s132, 1
    %p136 = scmp.eq.s32.totalorder %s14, 1
    %p137 = scmp.ne.s32.totalorder %s132, %s134
    %p138 = scmp.eq.s32.totalorder %s14, 0
    %p139 = por %p137, %p138
    %p140 = scmp.ne.s32.totalorder %s132, %s134
    %p141 = scmp.eq.s32.totalorder %s19, 1
    %p142 = por %p140, %p141
    %p143 = scmp.ne.s32.totalorder %s134, %s135
    %p144 = scmp.eq.s32.totalorder %s19, 0
    %p145 = por %p143, %p144
    %p146 = scmp.ne.s32.totalorder %s134, %s135
    %p147 = scmp.eq.s32.totalorder %s20, 1
    %p148 = por %p146, %p147
    %p150 = scmp.ne.s32.totalorder %s135, %s149
    %p151 = scmp.eq.s32.totalorder %s20, 0
    %p152 = por %p150, %p151
    %s154 = sadd.s32 %s153, 1
    %p157 = scmp.eq.s32.totalorder %s14, 1
    %p158 = scmp.ne.s32.totalorder %s153, %s155
    %p159 = scmp.eq.s32.totalorder %s14, 0
    %p160 = por %p158, %p159
    %p161 = scmp.ne.s32.totalorder %s153, %s155
    %p162 = scmp.eq.s32.totalorder %s19, 1
    %p163 = por %p161, %p162
    %p164 = scmp.ne.s32.totalorder %s155, %s156
    %p165 = scmp.eq.s32.totalorder %s19, 0
    %p166 = por %p164, %p165
    %p167 = scmp.ne.s32.totalorder %s155, %s156
    %p168 = scmp.eq.s32.totalorder %s20, 1
    %p169 = por %p167, %p168
    %p171 = scmp.ne.s32.totalorder %s156, %s170
    %p172 = scmp.eq.s32.totalorder %s20, 0
    %p173 = por %p171, %p172
    %s175 = sadd.s32 %s174, 1
    %p178 = scmp.eq.s32.totalorder %s14, 1
    %p179 = scmp.ne.s32.totalorder %s174, %s176
    %p180 = scmp.eq.s32.totalorder %s14, 0
    %p181 = por %p179, %p180
    %p182 = scmp.ne.s32.totalorder %s174, %s176
    %p183 = scmp.eq.s32.totalorder %s19, 1
    %p184 = por %p182, %p183
    %p185 = scmp.ne.s32.totalorder %s176, %s177
    %p186 = scmp.eq.s32.totalorder %s19, 0
    %p187 = por %p185, %p186
    %p188 = scmp.ne.s32.totalorder %s176, %s177
    %p189 = scmp.eq.s32.totalorder %s20, 1
    %p190 = por %p188, %p189
    %p192 = scmp.ne.s32.totalorder %s177, %s191
    %p193 = scmp.eq.s32.totalorder %s20, 0
    %p194 = por %p192, %p193
    %s195 = ssub.s32 %s14, %s21
    %p196 = scmp.eq.s32.totalorder %s195, 0
    %s198 = sadd.s32 %s197, 1
    %s199 = scalar_select %p196, %s197, %s198
    %p202 = pneg %p196
    %p203 = scmp.eq.s32.totalorder %s14, 1
    %p204 = por %p202, %p203
    %p205 = scmp.ne.s32.totalorder %s197, %s200
    %p206 = scmp.eq.s32.totalorder %s14, 0
    %p207 = por %p205, %p206
    %p208 = scmp.ne.s32.totalorder %s197, %s200
    %p209 = scmp.eq.s32.totalorder %s19, 1
    %p210 = por %p208, %p209
    %p211 = scmp.ne.s32.totalorder %s200, %s201
    %p212 = scmp.eq.s32.totalorder %s19, 0
    %p213 = por %p211, %p212
    %p214 = scmp.ne.s32.totalorder %s200, %s201
    %p215 = scmp.eq.s32.totalorder %s20, 1
    %p216 = por %p214, %p215
    %p218 = scmp.ne.s32.totalorder %s201, %s217
    %p219 = scmp.eq.s32.totalorder %s20, 0
    %p220 = por %p218, %p219
    %p221 = scmp.le.s32.totalorder 1, %s14
    %p222 = scmp.lt.s32.totalorder %s14, 3
    %p223 = pnand %p221, %p222
    %p224 = pneg %p223
    // Predicated region
    $region9: #{tpu_custom_call.1} parent=5 // pred_check
      _
    $region10: #{tpu_custom_call.1} parent=5 // pred_check_branch
      %226 = sbr.rel (%p223) target = $region12
    $region11: #{tpu_custom_call.1} parent=5 // pred_region
      %s227 = ssub.s32 %s14, 1
      // Predicated region
      $region13: #{tpu_custom_call.1} parent=11 // pred_check
        %p228 = pneg %p61
      $region14: #{tpu_custom_call.1} parent=11 // pred_check_branch
        %230 = sbr.rel (%p228) target = $region16
      $region15: #{tpu_custom_call.1} parent=11 // pred_region
        _
      $region16: #{tpu_custom_call.1} parent=11 // pred_fallthru
        _
      // Predicated region
      $region17: #{tpu_custom_call.1} parent=11 // pred_check
        %p231 = pneg %p82
      $region18: #{tpu_custom_call.1} parent=11 // pred_check_branch
        %233 = sbr.rel (%p231) target = $region20
      $region19: #{tpu_custom_call.1} parent=11 // pred_region
        _
      $region20: #{tpu_custom_call.1} parent=11 // pred_fallthru
        _
      // Predicated region
      $region21: #{tpu_custom_call.1} parent=11 // pred_check
        %p234 = pneg %p103
      $region22: #{tpu_custom_call.1} parent=11 // pred_check_branch
        %236 = sbr.rel (%p234) target = $region24
      $region23: #{tpu_custom_call.1} parent=11 // pred_region
        _
      $region24: #{tpu_custom_call.1} parent=11 // pred_fallthru
        _
      // Predicated region
      $region25: #{tpu_custom_call.1} parent=11 // pred_check
        %p237 = pneg %p124
      $region26: #{tpu_custom_call.1} parent=11 // pred_check_branch
        %239 = sbr.rel (%p237) target = $region28
      $region27: #{tpu_custom_call.1} parent=11 // pred_region
        _
      $region28: #{tpu_custom_call.1} parent=11 // pred_fallthru
        _
      // Predicated region
      $region29: #{tpu_custom_call.1} parent=11 // pred_check
        %p240 = pneg %p145
      $region30: #{tpu_custom_call.1} parent=11 // pred_check_branch
        %242 = sbr.rel (%p240) target = $region32
      $region31: #{tpu_custom_call.1} parent=11 // pred_region
        _
      $region32: #{tpu_custom_call.1} parent=11 // pred_fallthru
        _
      // Predicated region
      $region33: #{tpu_custom_call.1} parent=11 // pred_check
        %p243 = pneg %p166
      $region34: #{tpu_custom_call.1} parent=11 // pred_check_branch
        %245 = sbr.rel (%p243) target = $region36
      $region35: #{tpu_custom_call.1} parent=11 // pred_region
        _
      $region36: #{tpu_custom_call.1} parent=11 // pred_fallthru
        _
      // Predicated region
      $region37: #{tpu_custom_call.1} parent=11 // pred_check
        %p246 = pneg %p187
      $region38: #{tpu_custom_call.1} parent=11 // pred_check_branch
        %248 = sbr.rel (%p246) target = $region40
      $region39: #{tpu_custom_call.1} parent=11 // pred_region
        _
      $region40: #{tpu_custom_call.1} parent=11 // pred_fallthru
        _
    $region12: #{tpu_custom_call.1} parent=5 // pred_fallthru
      _
    %p249 = scmp.lt.s32.totalorder %s14, 2
    // Predicated region
    $region41: #{tpu_custom_call.1} parent=5 // pred_check
      %p250 = pneg %p249
    $region42: #{tpu_custom_call.1} parent=5 // pred_check_branch
      %252 = sbr.rel (%p250) target = $region44
    $region43: #{tpu_custom_call.1} parent=5 // pred_region
      // Predicated region
      $region45: #{tpu_custom_call.1} parent=43 // pred_check
        %p253 = pneg %p34
      $region46: #{tpu_custom_call.1} parent=43 // pred_check_branch
        %255 = sbr.rel (%p253) target = $region48
      $region47: #{tpu_custom_call.1} parent=43 // pred_region
        %s256 = smul.u32 8, %s14
        %p257 = scmp.lt.s32.totalorder %s256, 15
        %s258 = scalar_select %p257, %s256, 15
        %s259 = smul.addr %s258, 8
        %s260 = scalar_lea.vmem %s0, %s259
        %s261 = smul.u32 8, %s14
      $region48: #{tpu_custom_call.1} parent=43 // pred_fallthru
        _
    $region44: #{tpu_custom_call.1} parent=5 // pred_fallthru
      _
    %p262 = scmp.le.s32.totalorder 1, %s14
    %p263 = scmp.lt.s32.totalorder %s14, 3
    %p264 = pnand %p262, %p263
    %p265 = pneg %p264
    // Predicated region
    $region49: #{tpu_custom_call.1} parent=5 // pred_check
      _
    $region50: #{tpu_custom_call.1} parent=5 // pred_check_branch
      %267 = sbr.rel (%p264) target = $region52
    $region51: #{tpu_custom_call.1} parent=5 // pred_region
      %s268 = ssub.s32 %s14, 1
      %s269 = smul.u32 8, %s19
      %p270 = scmp.lt.s32.totalorder %s269, 15
      %s271 = scalar_select %p270, %s269, 15
      %s272 = smul.addr %s271, 8
      %s273 = scalar_lea.vmem %s0, %s272
      %p274 = pneg %p40
      %p275 = pneg %p37
      %p276 = pneg %p61
      %p277 = pneg %p58
      %p278 = pneg %p82
      %p279 = pneg %p79
      %p280 = pneg %p103
      %p281 = pneg %p100
      %p282 = pneg %p124
      %p283 = pneg %p121
      %p284 = pneg %p145
      %p285 = pneg %p142
      %p286 = pneg %p166
      %p287 = pneg %p163
      %p288 = pneg %p187
      %p289 = pneg %p184
      %p290 = pneg %p213
      %p291 = pneg %p210
      %s292 = smul.u32 8, %s19
      %p293 = scmp.lt.s32.totalorder %s292, 15
      %s294 = scalar_select %p293, %s292, 15
      %s295 = smul.addr %s294, 8
      %s296 = scalar_lea.vmem %s8, %s295
      %s297 = smul.u32 8, %s19
      %p298 = scmp.lt.s32.totalorder %s297, 15
      %s299 = scalar_select %p298, %s297, 15
      %s300 = smul.addr %s299, 8
      %s301 = scalar_lea.vmem %s0, %s300
      %s302 = smul.u32 8, %s19
      %s303 = smul.u32 8, %s19
      %p304 = scmp.lt.s32.totalorder %s303, 15
      %s305 = scalar_select %p304, %s303, 15
      %s306 = smul.addr %s305, 8
      %s307 = scalar_lea.vmem %s8, %s306
      %s308 = smul.u32 8, %s19
      %v310 = vld [vmem:[%s301] sm:$0xff]
      %v311 = vld [vmem:[%s301 + $0x8] sm:$0xff]
      %v312 = vld [vmem:[%s301 + $0x10] sm:$0xff]
      %v313 = vld [vmem:[%s301 + $0x18] sm:$0xff]
      %v314 = vld [vmem:[%s301 + $0x20] sm:$0xff]
      %v315 = vld [vmem:[%s301 + $0x28] sm:$0xff]
      %v316 = vld [vmem:[%s301 + $0x30] sm:$0xff]
      %v317 = vld [vmem:[%s301 + $0x38] sm:$0xff]
      %v318 = vtanh.pop %v310
      %v319 = vtanh.pop %v311
      %v320 = vtanh.pop %v312
      %v321 = vtanh.pop %v313
      %v322 = vtanh.pop %v314
      %v323 = vtanh.pop %v315
      %v324 = vtanh.pop %v316
      %v325 = vtanh.pop %v317
      %v326 = vmul.f32 %v310, %v310
      %v327 = vmul.f32 %v311, %v311
      %v328 = vmul.f32 %v312, %v312
      %v329 = vmul.f32 %v313, %v313
      %v330 = vmul.f32 %v314, %v314
      %v331 = vmul.f32 %v315, %v315
      %v332 = vmul.f32 %v316, %v316
      %v333 = vmul.f32 %v317, %v317
      %v334 = vmul.f32 %v326, -0.5
      %v335 = vmul.f32 %v327, -0.5
      %v336 = vmul.f32 %v328, -0.5
      %v337 = vmul.f32 %v329, -0.5
      %v338 = vmul.f32 %v330, -0.5
      %v339 = vmul.f32 %v331, -0.5
      %v340 = vmul.f32 %v332, -0.5
      %v341 = vmul.f32 %v333, -0.5
      %v342 = vmul.f32 %v334, 1.442695
      %v343 = vpow.pop %v342
      %v344 = vmul.f32 %v335, 1.442695
      %v345 = vpow.pop %v344
      %v346 = vmul.f32 %v336, 1.442695
      %v347 = vpow.pop %v346
      %v348 = vmul.f32 %v337, 1.442695
      %v349 = vpow.pop %v348
      %v350 = vmul.f32 %v338, 1.442695
      %v351 = vpow.pop %v350
      %v352 = vmul.f32 %v339, 1.442695
      %v353 = vpow.pop %v352
      %v354 = vmul.f32 %v340, 1.442695
      %v355 = vpow.pop %v354
      %v356 = vmul.f32 %v341, 1.442695
      %v357 = vpow.pop %v356
      %v358 = vmul.f32 %v343, 0.7511256
      %v359 = vmul.f32 %v345, 0.7511256
      %v360 = vmul.f32 %v347, 0.7511256
      %v361 = vmul.f32 %v349, 0.7511256
      %v362 = vmul.f32 %v351, 0.7511256
      %v363 = vmul.f32 %v353, 0.7511256
      %v364 = vmul.f32 %v355, 0.7511256
      %v365 = vmul.f32 %v357, 0.7511256
      %374 = vrot.lane.b32.xlu0 %v318, 16
      %v375 = vpop.permute.xlu0 %374
      %376 = vrot.lane.b32.xlu0 %v319, 16
      %v377 = vpop.permute.xlu0 %376
      %378 = vrot.lane.b32.xlu0 %v320, 16
      %v379 = vpop.permute.xlu0 %378
      %380 = vrot.lane.b32.xlu0 %v321, 16
      %v381 = vpop.permute.xlu0 %380
      %382 = vrot.lane.b32.xlu0 %v322, 16
      %v383 = vpop.permute.xlu0 %382
      %384 = vrot.lane.b32.xlu0 %v323, 16
      %v385 = vpop.permute.xlu0 %384
      %386 = vrot.lane.b32.xlu0 %v324, 16
      %v387 = vpop.permute.xlu0 %386
      %388 = vrot.lane.b32.xlu0 %v325, 16
      %v389 = vpop.permute.xlu0 %388
      %406 = vrot.lane.b32.xlu0 %v358, 32
      %v407 = vpop.permute.xlu0 %406
      %408 = vrot.lane.b32.xlu0 %v359, 32
      %v409 = vpop.permute.xlu0 %408
      %410 = vrot.lane.b32.xlu0 %v360, 32
      %v411 = vpop.permute.xlu0 %410
      %412 = vrot.lane.b32.xlu0 %v361, 32
      %v413 = vpop.permute.xlu0 %412
      %414 = vrot.lane.b32.xlu0 %v362, 32
      %v415 = vpop.permute.xlu0 %414
      %416 = vrot.lane.b32.xlu0 %v363, 32
      %v417 = vpop.permute.xlu0 %416
      %418 = vrot.lane.b32.xlu0 %v364, 32
      %v419 = vpop.permute.xlu0 %418
      %420 = vrot.lane.b32.xlu0 %v365, 32
      %v421 = vpop.permute.xlu0 %420
      %vm430 = vcmask 130048
      %v431 = vsel %vm430, %v310, %v375
      %v432 = vsel %vm430, %v311, %v377
      %v433 = vsel %vm430, %v312, %v379
      %v434 = vsel %vm430, %v313, %v381
      %v435 = vsel %vm430, %v314, %v383
      %v436 = vsel %vm430, %v315, %v385
      %v437 = vsel %vm430, %v316, %v387
      %v438 = vsel %vm430, %v317, %v389
      %vm439 = vcmask 261120
      %v440 = vsel %vm439, %v431, %v407
      %v441 = vsel %vm439, %v432, %v409
      %v442 = vsel %vm439, %v433, %v411
      %v443 = vsel %vm439, %v434, %v413
      %v444 = vsel %vm439, %v435, %v415
      %v445 = vsel %vm439, %v436, %v417
      %v446 = vsel %vm439, %v437, %v419
      %v447 = vsel %vm439, %v438, %v421
      %v448 = vpack.c.bf16 %v441, %v440
      %v449 = vpack.c.bf16 %v443, %v442
      %v450 = vpack.c.bf16 %v445, %v444
      %v451 = vpack.c.bf16 %v447, %v446
      %v452 = vld [vmem:[%s2] sm:$0xff]
      %v453 = vld [vmem:[%s2 + $0x8] sm:$0xf]
      %v454 = vld [vmem:[%s2 + $0xc] sm:$0xff]
      %v455 = vld [vmem:[%s2 + $0x14] sm:$0xf]
      %v456 = vld [vmem:[%s2 + $0x18] sm:$0xff]
      %v457 = vld [vmem:[%s2 + $0x20] sm:$0xf]
      %v458 = vld [vmem:[%s2 + $0x24] sm:$0xff]
      %v459 = vld [vmem:[%s2 + $0x2c] sm:$0xf]
      %v460 = vld [vmem:[%s2 + $0x30] sm:$0xff]
      %v461 = vld [vmem:[%s2 + $0x38] sm:$0xf]
      %v462 = vld [vmem:[%s2 + $0x3c] sm:$0xff]
      %v463 = vld [vmem:[%s2 + $0x44] sm:$0xf]
      %v476 = vunpack.c.l.b16 %v452
      %v477 = vunpack.c.h.b16 %v452
      %v478 = vunpack.c.l.b16 %v453
      %v479 = vunpack.c.l.b16 %v454
      %v480 = vunpack.c.h.b16 %v454
      %v481 = vunpack.c.l.b16 %v455
      %v482 = vunpack.c.l.b16 %v456
      %v483 = vunpack.c.h.b16 %v456
      %v484 = vunpack.c.l.b16 %v457
      %v485 = vunpack.c.l.b16 %v458
      %v486 = vunpack.c.h.b16 %v458
      %v487 = vunpack.c.l.b16 %v459
      %v488 = vunpack.c.l.b16 %v460
      %v489 = vunpack.c.h.b16 %v460
      %v490 = vunpack.c.l.b16 %v461
      %v491 = vunpack.c.l.b16 %v462
      %v492 = vunpack.c.h.b16 %v462
      %v493 = vunpack.c.l.b16 %v463
      %v494 = vpack.c.b16 %v479, %v476
      %v495 = vpack.c.b16 %v480, %v477
      %v496 = vpack.c.b16 %v481, %v478
      %v497 = vpack.c.b16 %v485, %v482
      %v498 = vpack.c.b16 %v486, %v483
      %v499 = vpack.c.b16 %v487, %v484
      %v500 = vpack.c.b16 %v491, %v488
      %v501 = vpack.c.b16 %v492, %v489
      %v502 = vpack.c.b16 %v493, %v490
      %vm512 = vcmask 392192
      %v514 = vsel %vm512, %v448, 0
      %v517 = vsel %vm512, %v449, 0
      %v520 = vsel %vm512, %v450, 0
      %v523 = vsel %vm512, %v451, 0
      %525 = vmatpush.bf16.msra.mxu0 0
      %526 = vmatpush.bf16.msra.mxu0 0
      %527 = vmatpush.bf16.msra.mxu0 0
      %528 = vmatpush.bf16.msra.mxu0 0
      %529 = vmatpush.bf16.msra.mxu0 0
      %530 = vmatpush.bf16.msra.mxu0 %v500
      %531 = vmatpush.bf16.msra.mxu0 %v497
      %532 = vmatpush.bf16.msra.mxu0 %v494
      %533 = vmatmul.bf16.gmra.mxu0 %v514
      %v534 = vpop.f32.mrf.mxu0
      %v535 = vadd.f32 0.0, %v534
      %v536 = vpop.f32.mrf.mxu0
      %v537 = vadd.f32 0.0, %v536
      %538 = vmatmul.bf16.gmra.mxu0 %v517
      %v539 = vpop.f32.mrf.mxu0
      %v540 = vadd.f32 0.0, %v539
      %v541 = vpop.f32.mrf.mxu0
      %v542 = vadd.f32 0.0, %v541
      %543 = vmatmul.bf16.gmra.mxu0 %v520
      %v544 = vpop.f32.mrf.mxu0
      %v545 = vadd.f32 0.0, %v544
      %v546 = vpop.f32.mrf.mxu0
      %v547 = vadd.f32 0.0, %v546
      %548 = vmatmul.bf16.gmra.mxu0 %v523
      %v549 = vpop.f32.mrf.mxu0
      %v550 = vadd.f32 0.0, %v549
      %v551 = vpop.f32.mrf.mxu0
      %v552 = vadd.f32 0.0, %v551
      %553 = vdwg.mxu0
      %554 = vmatpush.bf16.msra.mxu0 0
      %555 = vmatpush.bf16.msra.mxu0 0
      %556 = vmatpush.bf16.msra.mxu0 0
      %557 = vmatpush.bf16.msra.mxu0 0
      %558 = vmatpush.bf16.msra.mxu0 0
      %559 = vmatpush.bf16.msra.mxu0 %v501
      %560 = vmatpush.bf16.msra.mxu0 %v498
      %561 = vmatpush.bf16.msra.mxu0 %v495
      %562 = vmatmul.bf16.gmra.mxu0 %v514
      %v563 = vpop.f32.mrf.mxu0
      %v564 = vadd.f32 0.0, %v563
      %v565 = vpop.f32.mrf.mxu0
      %v566 = vadd.f32 0.0, %v565
      %567 = vmatmul.bf16.gmra.mxu0 %v517
      %v568 = vpop.f32.mrf.mxu0
      %v569 = vadd.f32 0.0, %v568
      %v570 = vpop.f32.mrf.mxu0
      %v571 = vadd.f32 0.0, %v570
      %572 = vmatmul.bf16.gmra.mxu0 %v520
      %v573 = vpop.f32.mrf.mxu0
      %v574 = vadd.f32 0.0, %v573
      %v575 = vpop.f32.mrf.mxu0
      %v576 = vadd.f32 0.0, %v575
      %577 = vmatmul.bf16.gmra.mxu0 %v523
      %v578 = vpop.f32.mrf.mxu0
      %v579 = vadd.f32 0.0, %v578
      %v580 = vpop.f32.mrf.mxu0
      %v581 = vadd.f32 0.0, %v580
      %582 = vdwg.mxu0
      %583 = vmatpush.bf16.msra.mxu0 0
      %584 = vmatpush.bf16.msra.mxu0 0
      %585 = vmatpush.bf16.msra.mxu0 0
      %586 = vmatpush.bf16.msra.mxu0 0
      %587 = vmatpush.bf16.msra.mxu0 0
      %588 = vmatpush.bf16.msra.mxu0 %v502
      %589 = vmatpush.bf16.msra.mxu0 %v499
      %590 = vmatpush.bf16.msra.mxu0 %v496
      %591 = vmatmul.bf16.gmra.mxu0 %v514
      %v592 = vpop.f32.mrf.mxu0
      %v593 = vadd.f32 0.0, %v592
      %v594 = vpop.f32.mrf.mxu0
      %v595 = vadd.f32 0.0, %v594
      %596 = vmatmul.bf16.gmra.mxu0 %v517
      %v597 = vpop.f32.mrf.mxu0
      %v598 = vadd.f32 0.0, %v597
      %v599 = vpop.f32.mrf.mxu0
      %v600 = vadd.f32 0.0, %v599
      %601 = vmatmul.bf16.gmra.mxu0 %v520
      %v602 = vpop.f32.mrf.mxu0
      %v603 = vadd.f32 0.0, %v602
      %v604 = vpop.f32.mrf.mxu0
      %v605 = vadd.f32 0.0, %v604
      %606 = vmatmul.bf16.gmra.mxu0 %v523
      %v607 = vpop.f32.mrf.mxu0
      %v608 = vadd.f32 0.0, %v607
      %v609 = vpop.f32.mrf.mxu0
      %v610 = vadd.f32 0.0, %v609
      %611 = vdwg.mxu0
      %v612 = vld [vmem:[%s3] sm:$0x3]
      %v614 = vperm.slane %v612, 0
      %v615 = vperm.slane %v612, 1
      %v618 = vadd.f32 %v564, %v614
      %v619 = vadd.f32 %v593, %v615
      %v620 = vadd.f32 %v566, %v614
      %v621 = vadd.f32 %v595, %v615
      %v622 = vadd.f32 %v569, %v614
      %v623 = vadd.f32 %v598, %v615
      %v624 = vadd.f32 %v571, %v614
      %v625 = vadd.f32 %v600, %v615
      %v626 = vadd.f32 %v574, %v614
      %v627 = vadd.f32 %v603, %v615
      %v628 = vadd.f32 %v576, %v614
      %v629 = vadd.f32 %v605, %v615
      %v630 = vadd.f32 %v579, %v614
      %v631 = vadd.f32 %v608, %v615
      %v632 = vadd.f32 %v581, %v614
      %v633 = vadd.f32 %v610, %v615
      %v634 = vld [vmem:[%s1] sm:$0xf]
      %v635 = vperm.slane %v634, 3
      %v636 = vmul.f32 %v635, %v535
      %v637 = vmul.f32 %v635, %v537
      %v638 = vmul.f32 %v635, %v540
      %v639 = vmul.f32 %v635, %v542
      %v640 = vmul.f32 %v635, %v545
      %v641 = vmul.f32 %v635, %v547
      %v642 = vmul.f32 %v635, %v550
      %v643 = vmul.f32 %v635, %v552
      %v644 = vperm.slane %v634, 2
      %v645 = vadd.f32 %v636, %v644
      %v646 = vadd.f32 %v637, %v644
      %v647 = vadd.f32 %v638, %v644
      %v648 = vadd.f32 %v639, %v644
      %v649 = vadd.f32 %v640, %v644
      %v650 = vadd.f32 %v641, %v644
      %v651 = vadd.f32 %v642, %v644
      %v652 = vadd.f32 %v643, %v644
      %v653 = vmul.f32 %v645, %v535
      %v654 = vmul.f32 %v646, %v537
      %v655 = vmul.f32 %v647, %v540
      %v656 = vmul.f32 %v648, %v542
      %v657 = vmul.f32 %v649, %v545
      %v658 = vmul.f32 %v650, %v547
      %v659 = vmul.f32 %v651, %v550
      %v660 = vmul.f32 %v652, %v552
      %v661 = vperm.slane %v634, 1
      %v662 = vadd.f32 %v653, %v661
      %v663 = vadd.f32 %v654, %v661
      %v664 = vadd.f32 %v655, %v661
      %v665 = vadd.f32 %v656, %v661
      %v666 = vadd.f32 %v657, %v661
      %v667 = vadd.f32 %v658, %v661
      %v668 = vadd.f32 %v659, %v661
      %v669 = vadd.f32 %v660, %v661
      %v670 = vmul.f32 %v662, %v535
      %v671 = vmul.f32 %v663, %v537
      %v672 = vmul.f32 %v664, %v540
      %v673 = vmul.f32 %v665, %v542
      %v674 = vmul.f32 %v666, %v545
      %v675 = vmul.f32 %v667, %v547
      %v676 = vmul.f32 %v668, %v550
      %v677 = vmul.f32 %v669, %v552
      %v678 = vperm.slane %v634, 0
      %v679 = vadd.f32 %v670, %v678
      %v680 = vadd.f32 %v671, %v678
      %v681 = vadd.f32 %v672, %v678
      %v682 = vadd.f32 %v673, %v678
      %v683 = vadd.f32 %v674, %v678
      %v684 = vadd.f32 %v675, %v678
      %v685 = vadd.f32 %v676, %v678
      %v686 = vadd.f32 %v677, %v678
      %v687 = vmul.f32 %v679, %v618
      %v688 = vmul.f32 %v680, %v620
      %v689 = vmul.f32 %v681, %v622
      %v690 = vmul.f32 %v682, %v624
      %v691 = vmul.f32 %v683, %v626
      %v692 = vmul.f32 %v684, %v628
      %v693 = vmul.f32 %v685, %v630
      %v694 = vmul.f32 %v686, %v632
      %v695 = vmul.f32 %v619, %v687
      %v696 = vmul.f32 %v621, %v688
      %v697 = vmul.f32 %v623, %v689
      %v698 = vmul.f32 %v625, %v690
      %v699 = vmul.f32 %v627, %v691
      %v700 = vmul.f32 %v629, %v692
      %v701 = vmul.f32 %v631, %v693
      %v702 = vmul.f32 %v633, %v694
      %v703 = vpack.c.bf16 %v696, %v695
      %v704 = vpack.c.bf16 %v698, %v697
      %v705 = vpack.c.bf16 %v700, %v699
      %v706 = vpack.c.bf16 %v702, %v701
      %v707 = vld [vmem:[%s4] sm:$0xf]
      %v708 = vld [vmem:[%s4 + $0x4] sm:$0xf]
      %v709 = vld [vmem:[%s4 + $0x8] sm:$0xf]
      %v710 = vld [vmem:[%s4 + $0xc] sm:$0xf]
      %v711 = vld [vmem:[%s4 + $0x10] sm:$0xf]
      %v712 = vld [vmem:[%s4 + $0x14] sm:$0xf]
      %v713 = vld [vmem:[%s4 + $0x18] sm:$0xf]
      %v714 = vld [vmem:[%s4 + $0x1c] sm:$0xf]
      %v715 = vld [vmem:[%s4 + $0x20] sm:$0xf]
      %v716 = vld [vmem:[%s4 + $0x24] sm:$0xf]
      %v717 = vld [vmem:[%s4 + $0x28] sm:$0xf]
      %v718 = vld [vmem:[%s4 + $0x2c] sm:$0xf]
      %v719 = vld [vmem:[%s4 + $0x30] sm:$0xf]
      %v720 = vld [vmem:[%s4 + $0x34] sm:$0xf]
      %v721 = vld [vmem:[%s4 + $0x38] sm:$0xf]
      %v722 = vld [vmem:[%s4 + $0x3c] sm:$0xf]
      %v739 = vunpack.c.l.b16 %v707
      %v740 = vunpack.c.l.b16 %v708
      %v741 = vunpack.c.l.b16 %v709
      %v742 = vunpack.c.l.b16 %v710
      %v743 = vunpack.c.l.b16 %v711
      %v744 = vunpack.c.l.b16 %v712
      %v745 = vunpack.c.l.b16 %v713
      %v746 = vunpack.c.l.b16 %v714
      %v747 = vunpack.c.l.b16 %v715
      %v748 = vunpack.c.l.b16 %v716
      %v749 = vunpack.c.l.b16 %v717
      %v750 = vunpack.c.l.b16 %v718
      %v751 = vunpack.c.l.b16 %v719
      %v752 = vunpack.c.l.b16 %v720
      %v753 = vunpack.c.l.b16 %v721
      %v754 = vunpack.c.l.b16 %v722
      %v755 = vpack.c.b16 %v740, %v739
      %v756 = vpack.c.b16 %v742, %v741
      %v757 = vpack.c.b16 %v744, %v743
      %v758 = vpack.c.b16 %v746, %v745
      %v759 = vpack.c.b16 %v748, %v747
      %v760 = vpack.c.b16 %v750, %v749
      %v761 = vpack.c.b16 %v752, %v751
      %v762 = vpack.c.b16 %v754, %v753
      %771 = vmatpush.bf16.msra.mxu0 %v762
      %772 = vmatpush.bf16.msra.mxu0 %v761
      %773 = vmatpush.bf16.msra.mxu0 %v760
      %774 = vmatpush.bf16.msra.mxu0 %v759
      %775 = vmatpush.bf16.msra.mxu0 %v758
      %776 = vmatpush.bf16.msra.mxu0 %v757
      %777 = vmatpush.bf16.msra.mxu0 %v756
      %778 = vmatpush.bf16.msra.mxu0 %v755
      %779 = vmatmul.bf16.gmra.mxu0 %v703
      %v780 = vpop.f32.mrf.mxu0
      %v781 = vadd.f32 0.0, %v780
      %v782 = vpop.f32.mrf.mxu0
      %v783 = vadd.f32 0.0, %v782
      %784 = vmatmul.bf16.gmra.mxu0 %v704
      %v785 = vpop.f32.mrf.mxu0
      %v786 = vadd.f32 0.0, %v785
      %v787 = vpop.f32.mrf.mxu0
      %v788 = vadd.f32 0.0, %v787
      %789 = vmatmul.bf16.gmra.mxu0 %v705
      %v790 = vpop.f32.mrf.mxu0
      %v791 = vadd.f32 0.0, %v790
      %v792 = vpop.f32.mrf.mxu0
      %v793 = vadd.f32 0.0, %v792
      %794 = vmatmul.bf16.gmra.mxu0 %v706
      %v795 = vpop.f32.mrf.mxu0
      %v796 = vadd.f32 0.0, %v795
      %v797 = vpop.f32.mrf.mxu0
      %v798 = vadd.f32 0.0, %v797
      %799 = vdwg.mxu0
      %vm800 = vcmask 523264
      %v801 = vsel %vm800, %v781, -inf
      %802 = vmax.xlane.f32.xlu0 %v801
      %v803 = vpop.xlane.xlu0 %802
      %v804 = vsel %vm800, %v783, -inf
      %805 = vmax.xlane.f32.xlu0 %v804
      %v806 = vpop.xlane.xlu0 %805
      %v807 = vsel %vm800, %v786, -inf
      %808 = vmax.xlane.f32.xlu0 %v807
      %v809 = vpop.xlane.xlu0 %808
      %v810 = vsel %vm800, %v788, -inf
      %811 = vmax.xlane.f32.xlu0 %v810
      %v812 = vpop.xlane.xlu0 %811
      %v813 = vsel %vm800, %v791, -inf
      %814 = vmax.xlane.f32.xlu0 %v813
      %v815 = vpop.xlane.xlu0 %814
      %v816 = vsel %vm800, %v793, -inf
      %817 = vmax.xlane.f32.xlu0 %v816
      %v818 = vpop.xlane.xlu0 %817
      %v819 = vsel %vm800, %v796, -inf
      %820 = vmax.xlane.f32.xlu0 %v819
      %v821 = vpop.xlane.xlu0 %820
      %v822 = vsel %vm800, %v798, -inf
      %823 = vmax.xlane.f32.xlu0 %v822
      %v824 = vpop.xlane.xlu0 %823
      %v825 = vsub.f32 %v781, %v803
      %v826 = vsub.f32 %v783, %v806
      %v827 = vsub.f32 %v786, %v809
      %v828 = vsub.f32 %v788, %v812
      %v829 = vsub.f32 %v791, %v815
      %v830 = vsub.f32 %v793, %v818
      %v831 = vsub.f32 %v796, %v821
      %v832 = vsub.f32 %v798, %v824
      %v833 = vmul.f32 %v825, 1.442695
      %v834 = vpow.pop %v833
      %v835 = vmul.f32 %v826, 1.442695
      %v836 = vpow.pop %v835
      %v837 = vmul.f32 %v827, 1.442695
      %v838 = vpow.pop %v837
      %v839 = vmul.f32 %v828, 1.442695
      %v840 = vpow.pop %v839
      %v841 = vmul.f32 %v829, 1.442695
      %v842 = vpow.pop %v841
      %v843 = vmul.f32 %v830, 1.442695
      %v844 = vpow.pop %v843
      %v845 = vmul.f32 %v831, 1.442695
      %v846 = vpow.pop %v845
      %v847 = vmul.f32 %v832, 1.442695
      %v848 = vpow.pop %v847
      %v849 = vsel %vm800, %v834, 0.0
      %850 = vadd.xlane.f32.xlu0 %v849
      %v851 = vpop.xlane.xlu0 %850
      %v852 = vsel %vm800, %v836, 0.0
      %853 = vadd.xlane.f32.xlu0 %v852
      %v854 = vpop.xlane.xlu0 %853
      %v855 = vsel %vm800, %v838, 0.0
      %856 = vadd.xlane.f32.xlu0 %v855
      %v857 = vpop.xlane.xlu0 %856
      %v858 = vsel %vm800, %v840, 0.0
      %859 = vadd.xlane.f32.xlu0 %v858
      %v860 = vpop.xlane.xlu0 %859
      %v861 = vsel %vm800, %v842, 0.0
      %862 = vadd.xlane.f32.xlu0 %v861
      %v863 = vpop.xlane.xlu0 %862
      %v864 = vsel %vm800, %v844, 0.0
      %865 = vadd.xlane.f32.xlu0 %v864
      %v866 = vpop.xlane.xlu0 %865
      %v867 = vsel %vm800, %v846, 0.0
      %868 = vadd.xlane.f32.xlu0 %v867
      %v869 = vpop.xlane.xlu0 %868
      %v870 = vsel %vm800, %v848, 0.0
      %871 = vadd.xlane.f32.xlu0 %v870
      %v872 = vpop.xlane.xlu0 %871
      %v873 = vrcp.pop %v851
      %v874 = vrcp.pop %v854
      %v875 = vrcp.pop %v857
      %v876 = vrcp.pop %v860
      %v877 = vrcp.pop %v863
      %v878 = vrcp.pop %v866
      %v879 = vrcp.pop %v869
      %v880 = vrcp.pop %v872
      %v881 = vmul.f32 %v834, %v873
      %v882 = vmul.f32 %v836, %v874
      %v883 = vmul.f32 %v838, %v875
      %v884 = vmul.f32 %v840, %v876
      %v885 = vmul.f32 %v842, %v877
      %v886 = vmul.f32 %v844, %v878
      %v887 = vmul.f32 %v846, %v879
      %v888 = vmul.f32 %v848, %v880
      %v889 = vpack.c.bf16 %v882, %v881
      %v890 = vpack.c.bf16 %v884, %v883
      %v891 = vpack.c.bf16 %v886, %v885
      %v892 = vpack.c.bf16 %v888, %v887
      %v893 = vld [vmem:[%s5] sm:$0xf]
      %v894 = vld [vmem:[%s5 + $0x4] sm:$0xf]
      %v895 = vld [vmem:[%s5 + $0x8] sm:$0xf]
      %v896 = vld [vmem:[%s5 + $0xc] sm:$0xf]
      %v897 = vld [vmem:[%s5 + $0x10] sm:$0xf]
      %v898 = vld [vmem:[%s5 + $0x14] sm:$0xf]
      %v899 = vld [vmem:[%s5 + $0x18] sm:$0xf]
      %v900 = vld [vmem:[%s5 + $0x1c] sm:$0xf]
      %v909 = vunpack.c.l.b16 %v893
      %v910 = vunpack.c.l.b16 %v894
      %v911 = vunpack.c.l.b16 %v895
      %v912 = vunpack.c.l.b16 %v896
      %v913 = vunpack.c.l.b16 %v897
      %v914 = vunpack.c.l.b16 %v898
      %v915 = vunpack.c.l.b16 %v899
      %v916 = vunpack.c.l.b16 %v900
      %v917 = vpack.c.b16 %v910, %v909
      %v918 = vpack.c.b16 %v912, %v911
      %v919 = vpack.c.b16 %v914, %v913
      %v920 = vpack.c.b16 %v916, %v915
      %v926 = vsel %vm800, %v889, 0
      %v929 = vsel %vm800, %v890, 0
      %v932 = vsel %vm800, %v891, 0
      %v935 = vsel %vm800, %v892, 0
      %937 = vmatpush.bf16.msra.mxu0 0
      %938 = vmatpush.bf16.msra.mxu0 0
      %939 = vmatpush.bf16.msra.mxu0 0
      %940 = vmatpush.bf16.msra.mxu0 0
      %941 = vmatpush.bf16.msra.mxu0 %v920
      %942 = vmatpush.bf16.msra.mxu0 %v919
      %943 = vmatpush.bf16.msra.mxu0 %v918
      %944 = vmatpush.bf16.msra.mxu0 %v917
      %945 = vmatmul.bf16.gmra.mxu0 %v926
      %v946 = vpop.f32.mrf.mxu0
      %v947 = vadd.f32 0.0, %v946
      %v948 = vpop.f32.mrf.mxu0
      %v949 = vadd.f32 0.0, %v948
      %950 = vmatmul.bf16.gmra.mxu0 %v929
      %v951 = vpop.f32.mrf.mxu0
      %v952 = vadd.f32 0.0, %v951
      %v953 = vpop.f32.mrf.mxu0
      %v954 = vadd.f32 0.0, %v953
      %955 = vmatmul.bf16.gmra.mxu0 %v932
      %v956 = vpop.f32.mrf.mxu0
      %v957 = vadd.f32 0.0, %v956
      %v958 = vpop.f32.mrf.mxu0
      %v959 = vadd.f32 0.0, %v958
      %960 = vmatmul.bf16.gmra.mxu0 %v935
      %v961 = vpop.f32.mrf.mxu0
      %v962 = vadd.f32 0.0, %v961
      %v963 = vpop.f32.mrf.mxu0
      %v964 = vadd.f32 0.0, %v963
      %965 = vdwg.mxu0
      %v966 = vmul.f32 %v687, %v947
      %v967 = vmul.f32 %v688, %v949
      %v968 = vmul.f32 %v689, %v952
      %v969 = vmul.f32 %v690, %v954
      %v970 = vmul.f32 %v691, %v957
      %v971 = vmul.f32 %v692, %v959
      %v972 = vmul.f32 %v693, %v962
      %v973 = vmul.f32 %v694, %v964
      %v974 = vpack.c.bf16 %v967, %v966
      %v975 = vpack.c.bf16 %v969, %v968
      %v976 = vpack.c.bf16 %v971, %v970
      %v977 = vpack.c.bf16 %v973, %v972
      %v978 = vld [vmem:[%s6] sm:$0xf]
      %v979 = vld [vmem:[%s6 + $0x4] sm:$0xf]
      %v980 = vld [vmem:[%s6 + $0x8] sm:$0xf]
      %v981 = vld [vmem:[%s6 + $0xc] sm:$0xf]
      %v982 = vld [vmem:[%s6 + $0x10] sm:$0xf]
      %v983 = vld [vmem:[%s6 + $0x14] sm:$0xf]
      %v984 = vld [vmem:[%s6 + $0x18] sm:$0xf]
      %v985 = vld [vmem:[%s6 + $0x1c] sm:$0xf]
      %v986 = vld [vmem:[%s6 + $0x20] sm:$0xf]
      %v987 = vld [vmem:[%s6 + $0x24] sm:$0xf]
      %v988 = vld [vmem:[%s6 + $0x28] sm:$0xf]
      %v989 = vld [vmem:[%s6 + $0x2c] sm:$0xf]
      %v990 = vld [vmem:[%s6 + $0x30] sm:$0xf]
      %v991 = vld [vmem:[%s6 + $0x34] sm:$0xf]
      %v992 = vld [vmem:[%s6 + $0x38] sm:$0xf]
      %v993 = vld [vmem:[%s6 + $0x3c] sm:$0xf]
      %v994 = vld [vmem:[%s7] sm:$0x1]
      %v996 = vperm.slane %v994, 0
      %v1014 = vunpack.c.l.b16 %v978
      %v1015 = vunpack.c.l.b16 %v979
      %v1016 = vunpack.c.l.b16 %v980
      %v1017 = vunpack.c.l.b16 %v981
      %v1018 = vunpack.c.l.b16 %v982
      %v1019 = vunpack.c.l.b16 %v983
      %v1020 = vunpack.c.l.b16 %v984
      %v1021 = vunpack.c.l.b16 %v985
      %v1022 = vunpack.c.l.b16 %v986
      %v1023 = vunpack.c.l.b16 %v987
      %v1024 = vunpack.c.l.b16 %v988
      %v1025 = vunpack.c.l.b16 %v989
      %v1026 = vunpack.c.l.b16 %v990
      %v1027 = vunpack.c.l.b16 %v991
      %v1028 = vunpack.c.l.b16 %v992
      %v1029 = vunpack.c.l.b16 %v993
      %v1030 = vpack.c.b16 %v1015, %v1014
      %v1031 = vpack.c.b16 %v1017, %v1016
      %v1032 = vpack.c.b16 %v1019, %v1018
      %v1033 = vpack.c.b16 %v1021, %v1020
      %v1034 = vpack.c.b16 %v1023, %v1022
      %v1035 = vpack.c.b16 %v1025, %v1024
      %v1036 = vpack.c.b16 %v1027, %v1026
      %v1037 = vpack.c.b16 %v1029, %v1028
      %1046 = vmatpush.bf16.msra.mxu0 %v1037
      %1047 = vmatpush.bf16.msra.mxu0 %v1036
      %1048 = vmatpush.bf16.msra.mxu0 %v1035
      %1049 = vmatpush.bf16.msra.mxu0 %v1034
      %1050 = vmatpush.bf16.msra.mxu0 %v1033
      %1051 = vmatpush.bf16.msra.mxu0 %v1032
      %1052 = vmatpush.bf16.msra.mxu0 %v1031
      %1053 = vmatpush.bf16.msra.mxu0 %v1030
      %1054 = vmatmul.bf16.gmra.mxu0 %v974
      %v1055 = vpop.f32.mrf.mxu0
      %v1056 = vadd.f32 %v996, %v1055
      %v1057 = vpop.f32.mrf.mxu0
      %v1058 = vadd.f32 %v996, %v1057
      %1059 = vmatmul.bf16.gmra.mxu0 %v975
      %v1060 = vpop.f32.mrf.mxu0
      %v1061 = vadd.f32 %v996, %v1060
      %v1062 = vpop.f32.mrf.mxu0
      %v1063 = vadd.f32 %v996, %v1062
      %1064 = vmatmul.bf16.gmra.mxu0 %v976
      %v1065 = vpop.f32.mrf.mxu0
      %v1066 = vadd.f32 %v996, %v1065
      %v1067 = vpop.f32.mrf.mxu0
      %v1068 = vadd.f32 %v996, %v1067
      %1069 = vmatmul.bf16.gmra.mxu0 %v977
      %v1070 = vpop.f32.mrf.mxu0
      %v1071 = vadd.f32 %v996, %v1070
      %v1072 = vpop.f32.mrf.mxu0
      %v1073 = vadd.f32 %v996, %v1072
      %1074 = vdwg.mxu0
      %1075 = vst.msk [vmem:[%s307] sm:$0xff] %vm439, %v1056
      %1076 = vst.msk [vmem:[%s307 + $0x8] sm:$0xff] %vm439, %v1058
      %1077 = vst.msk [vmem:[%s307 + $0x10] sm:$0xff] %vm439, %v1061
      %1078 = vst.msk [vmem:[%s307 + $0x18] sm:$0xff] %vm439, %v1063
      %1079 = vst.msk [vmem:[%s307 + $0x20] sm:$0xff] %vm439, %v1066
      %1080 = vst.msk [vmem:[%s307 + $0x28] sm:$0xff] %vm439, %v1068
      %1081 = vst.msk [vmem:[%s307 + $0x30] sm:$0xff] %vm439, %v1071
      %1082 = vst.msk [vmem:[%s307 + $0x38] sm:$0xff] %vm439, %v1073
      %s1083 = smul.u32 8, %s19
      %p1084 = scmp.lt.s32.totalorder %s1083, 15
      %s1085 = scalar_select %p1084, %s1083, 15
      %s1086 = smul.addr %s1085, 8
      %s1087 = scalar_lea.vmem %s8, %s1086
      // Predicated region
      $region53: #{tpu_custom_call.1} parent=51 // pred_check
        %p1088 = pneg %p210
      $region54: #{tpu_custom_call.1} parent=51 // pred_check_branch
        %1090 = sbr.rel (%p1088) target = $region56
      $region55: #{tpu_custom_call.1} parent=51 // pred_region
        %s1091 = smul.u32 8, %s19
      $region56: #{tpu_custom_call.1} parent=51 // pred_fallthru
        _
    $region52: #{tpu_custom_call.1} parent=5 // pred_fallthru
      _
    %p1092 = scmp.le.s32.totalorder 2, %s14
    // Predicated region
    $region57: #{tpu_custom_call.1} parent=5 // pred_check
      %p1093 = pneg %p1092
    $region58: #{tpu_custom_call.1} parent=5 // pred_check_branch
      %1095 = sbr.rel (%p1093) target = $region60
    $region59: #{tpu_custom_call.1} parent=5 // pred_region
      %s1096 = ssub.s32 %s14, 2
      // Predicated region
      $region61: #{tpu_custom_call.1} parent=59 // pred_check
        %p1097 = pneg %p216
      $region62: #{tpu_custom_call.1} parent=59 // pred_check_branch
        %1099 = sbr.rel (%p1097) target = $region64
      $region63: #{tpu_custom_call.1} parent=59 // pred_region
        %s1100 = smul.u32 8, %s20
        %p1101 = scmp.lt.s32.totalorder %s1100, 15
        %s1102 = scalar_select %p1101, %s1100, 15
        %s1103 = smul.addr %s1102, 8
        %s1104 = scalar_lea.vmem %s8, %s1103
      $region64: #{tpu_custom_call.1} parent=59 // pred_fallthru
        _
    $region60: #{tpu_custom_call.1} parent=5 // pred_fallthru
      _
  $region6: #{tpu_custom_call.1} parent=0 // loop_footer
    %s18 = sadd.s32 1, %s14
  $region7: #{tpu_custom_call.1} parent=0 // loop_footer_branch
    %13 = sbr.rel target = $region3
  $region8: #{tpu_custom_call.1} parent=0 // loop_exit
    _

</llo_original>
